<compile_context>
chip_gen: v7x
topology: tpu7x:2x2x1
jax: 0.10.0
libtpu: 0.0.40
codegen_flags: <defaults>
</compile_context>

<pallas_src>
import jax
import jax.numpy as jnp
from jax.experimental import pallas as pl
from jax.experimental.pallas import tpu as pltpu


# ----------------------------------------------------------------------------
# Kernels
# ----------------------------------------------------------------------------

def lstm_gate_tile_kernel(xh_ref, c_ref, w_ref, b_ref,
                          hnew_ref, cnew_ref, hbf16_ref):
    """One H-tile of the single-step LSTM cell.

    xh_ref   : [B, E+H]     concat(embedded, h_prev), weight dtype (bf16)
    c_ref    : [B, tH]      previous cell state slice (f32)
    w_ref    : [E+H, 4*tH]  fused gate-weight slab, tile-major (bf16)
    b_ref    : [1, 4*tH]    fused bias slab (f32)
    hnew_ref : [B, tH]      new hidden state slice (f32)
    cnew_ref : [B, tH]      new cell state slice (f32, aliased over c_prev)
    hbf16_ref: [B, tH]      new hidden state slice, weight dtype (for fc kernel)
    """
    tH = c_ref.shape[1]

    # One MXU contraction over K = E+H, f32 accumulation.
    gates = jnp.dot(xh_ref[...], w_ref[...],
                    preferred_element_type=jnp.float32) + b_ref[...]

    i = jax.nn.sigmoid(gates[:, 0 * tH:1 * tH])
    f = jax.nn.sigmoid(gates[:, 1 * tH:2 * tH])
    g = jnp.tanh(gates[:, 2 * tH:3 * tH])
    o = jax.nn.sigmoid(gates[:, 3 * tH:4 * tH])

    c_new = f * c_ref[...] + i * g
    h_new = o * jnp.tanh(c_new)

    cnew_ref[...] = c_new
    hnew_ref[...] = h_new
    hbf16_ref[...] = h_new.astype(hbf16_ref.dtype)


def fc_tile_kernel(h_ref, w_ref, b_ref, pred_ref):
    """One O-tile of prediction = h_new @ W_fc^T + b_fc.

    h_ref   : [B, H]    new hidden state, already in weight dtype (bf16)
    w_ref   : [H, tO]   fc weight slab (bf16)
    b_ref   : [1, tO]   fc bias slab (f32)
    pred_ref: [B, tO]   f32
    """
    pred_ref[...] = (jnp.dot(h_ref[...], w_ref[...],
                             preferred_element_type=jnp.float32)
                     + b_ref[...]).astype(pred_ref.dtype)


# ----------------------------------------------------------------------------
# VMEM budget & tile selection (one-time, not in the decode step)
# ----------------------------------------------------------------------------

def _vmem_limit_bytes():
    """Explicit scoped-VMEM limit: ~3/4 of physical, capped at 64 MiB.
    v7x (64 MiB physical) -> 48 MiB; v5e/v6e (128 MiB physical) -> 64 MiB."""
    cap = 64 * 1024 * 1024
    try:
        cap = int(pltpu.get_tpu_info().vmem_capacity_bytes)
    except Exception:
        pass
    return max(32 * 1024 * 1024, min(cap * 3 // 4, 64 * 1024 * 1024))


def _choose_tile(dim, candidates, bytes_per_col, vmem_limit, cap=None):
    """Largest tile (from descending `candidates`) dividing `dim` whose
    double-buffered weight slab fits comfortably inside the scoped budget."""
    slab_limit = int(0.8 * vmem_limit)
    for c in candidates:
        if cap is not None and c > cap:
            continue
        if dim % c != 0:
            continue
        if 2 * bytes_per_col * c > slab_limit:
            continue
        return c
    for c in candidates:  # fall back ignoring the VMEM constraint
        if (cap is None or c <= cap) and dim % c == 0:
            return c
    return dim


def _interleave_gates(w, hid_dim, tile_h):
    """Reorder the trailing 4H axis from gate-major [i|f|g|o] (each H wide)
    to tile-major blocks [i_t|f_t|g_t|o_t] (each tile_h wide)."""
    n_tiles = hid_dim // tile_h
    lead = w.shape[:-1]
    w4 = w.reshape(*lead, 4, n_tiles, tile_h)   # [..., gate, tile, pos]
    w4 = jnp.swapaxes(w4, -3, -2)               # [..., tile, gate, pos]
    return w4.reshape(*lead, 4 * hid_dim)


def init_raw_params(key, output_dim, emb_dim, hid_dim):
    """Raw f32 parameters in PyTorch layout (used for the reference check)."""
    ks = jax.random.split(key, 7)
    s = 0.02
    return {
        "embedding": s * jax.random.normal(ks[0], (output_dim, emb_dim), jnp.float32),
        "w_ih": s * jax.random.normal(ks[1], (4 * hid_dim, emb_dim), jnp.float32),
        "w_hh": s * jax.random.normal(ks[2], (4 * hid_dim, hid_dim), jnp.float32),
        "b_ih": s * jax.random.normal(ks[3], (4 * hid_dim,), jnp.float32),
        "b_hh": s * jax.random.normal(ks[4], (4 * hid_dim,), jnp.float32),
        "w_fc": s * jax.random.normal(ks[5], (output_dim, hid_dim), jnp.float32),
        "b_fc": s * jax.random.normal(ks[6], (output_dim,), jnp.float32),
    }


def prepare_params(raw, emb_dim, hid_dim, weight_dtype=jnp.bfloat16,
                   max_tile_h=None, max_tile_o=None):
    """Convert PyTorch-layout weights into the slab-contiguous kernel layout."""
    out_dim = raw["w_fc"].shape[0]
    wbytes = jnp.dtype(weight_dtype).itemsize
    vmem_limit = _vmem_limit_bytes()

    tile_h = _choose_tile(hid_dim, (512, 256, 128, 64, 32, 16, 8),
                          bytes_per_col=(emb_dim + hid_dim) * 4 * wbytes,
                          vmem_limit=vmem_limit, cap=max_tile_h)
    tile_o = _choose_tile(out_dim, (4096, 2048, 1024, 512, 256, 128),
                          bytes_per_col=hid_dim * wbytes,
                          vmem_limit=vmem_limit, cap=max_tile_o)

    n_h = hid_dim // tile_h
    n_o = out_dim // tile_o

    # Fuse the two gate matmuls: [x, h] @ [W_ih | W_hh]^T  ->  [E+H, 4H],
    # reorder the gate axis tile-major, then make each H-tile's slab contiguous:
    # [n_h, E+H, 4*tH].
    w_cat_t = jnp.concatenate([raw["w_ih"], raw["w_hh"]], axis=1).T   # [E+H, 4H]
    w_gates = _interleave_gates(w_cat_t, hid_dim, tile_h)
    w_gates = (w_gates.reshape(emb_dim + hid_dim, n_h, 4 * tile_h)
               .transpose(1, 0, 2).astype(weight_dtype))              # [n_h, E+H, 4*tH]

    b_gates = _interleave_gates((raw["b_ih"] + raw["b_hh"])[None, :],
                                hid_dim, tile_h)
    b_gates = (b_gates.reshape(1, n_h, 4 * tile_h)
               .transpose(1, 0, 2).astype(jnp.float32))               # [n_h, 1, 4*tH]

    # fc weights, slab-contiguous per O-tile: [n_o, H, tO].
    w_fc = (raw["w_fc"].T.reshape(hid_dim, n_o, tile_o)
            .transpose(1, 0, 2).astype(weight_dtype))
    b_fc = raw["b_fc"].reshape(n_o, 1, tile_o).astype(jnp.float32)    # [n_o, 1, tO]

    return {
        "embedding": raw["embedding"].astype(weight_dtype),           # [O, E]
        "w_gates": w_gates,
        "b_gates": b_gates,
        "w_fc": w_fc,
        "b_fc": b_fc,
        "vmem_limit_bytes": vmem_limit,
    }


# ----------------------------------------------------------------------------
# Forward pass (matches Decoder.forward, eval mode)
# ----------------------------------------------------------------------------

def decoder_forward(tokens, hidden, cell, params):
    """tokens: int32 [B]; hidden/cell: f32 [1, B, H].
    Returns (prediction [B, O] f32, hidden [1, B, H] f32, cell [1, B, H] f32)."""
    emb = params["embedding"]
    w_gates = params["w_gates"]        # [n_h, E+H, 4*tH]
    b_gates = params["b_gates"]        # [n_h, 1, 4*tH]
    w_fc = params["w_fc"]              # [n_o, H, tO]
    b_fc = params["b_fc"]              # [n_o, 1, tO]
    vmem_limit = params["vmem_limit_bytes"]

    n_h, EH, four_tH = w_gates.shape
    tH = four_tH // 4
    n_o, H, tO = w_fc.shape
    B = tokens.shape[0]
    E = emb.shape[1]
    O = n_o * tO
    wdt = w_gates.dtype
    wb = jnp.dtype(wdt).itemsize
    assert EH == E + H and hidden.shape[-1] == H

    # Embedding gather; input.unsqueeze(0) / output.squeeze(0) are implicit
    # (seq_len == 1). nn.Dropout in eval mode is identity.
    # TODO(synk): fuse the gather into the pipeline (PrefetchScalarGridSpec +
    #             pl.Element row specs) and add training-mode dropout via pltpu PRNG.
    x = jnp.take(emb, tokens, axis=0)                               # [B, E]
    h0 = hidden[0]
    c0 = cell[0]
    xh = jnp.concatenate([x.astype(wdt), h0.astype(wdt)], axis=1)   # [B, E+H]

    # --- LSTM cell: grid over H tiles, streaming contiguous (E+H, 4*tH) slabs. ---
    lstm_cost = pl.CostEstimate(
        flops=2 * B * (E + H) * 4 * H,
        transcendentals=5 * B * H,
        bytes_accessed=((E + H) * 4 * H * wb          # gate weights
                        + 4 * H * 4                    # fused bias
                        + B * (E + H) * wb             # xh (resident)
                        + B * H * 4                    # c_prev
                        + B * H * (4 + 4 + wb)))       # h_new f32, c_new f32, h bf16

    h_new, c_new, h_lp = pl.pallas_call(
        lstm_gate_tile_kernel,
        out_shape=(jax.ShapeDtypeStruct((B, H), jnp.float32),
                   jax.ShapeDtypeStruct((B, H), jnp.float32),
                   jax.ShapeDtypeStruct((B, H), wdt)),
        grid=(n_h,),
        in_specs=[
            pl.BlockSpec((B, E + H), lambda j: (0, 0)),                    # xh (resident)
            pl.BlockSpec((B, tH), lambda j: (0, j)),                       # c_prev slice
            pl.BlockSpec((pl.Squeezed(), E + H, 4 * tH), lambda j: (j, 0, 0)),  # weight slab
            pl.BlockSpec((pl.Squeezed(), 1, 4 * tH), lambda j: (j, 0, 0)),      # bias slab
        ],
        out_specs=(
            pl.BlockSpec((B, tH), lambda j: (0, j)),                       # h_new (f32)
            pl.BlockSpec((B, tH), lambda j: (0, j)),                       # c_new (f32)
            pl.BlockSpec((B, tH), lambda j: (0, j)),                       # h_new (bf16)
        ),
        input_output_aliases={1: 1},   # write new cell state in place over c_prev
        compiler_params=pltpu.CompilerParams(
            dimension_semantics=("parallel",),
            vmem_limit_bytes=vmem_limit),
        cost_estimate=lstm_cost,
    )(xh, c0, w_gates, b_gates)

    # --- fc_out projection: grid over O tiles, streaming contiguous (H, tO) slabs. ---
    fc_cost = pl.CostEstimate(
        flops=2 * B * H * O,
        transcendentals=0,
        bytes_accessed=H * O * wb + O * 4 + B * H * wb + B * O * 4)

    pred = pl.pallas_call(
        fc_tile_kernel,
        out_shape=jax.ShapeDtypeStruct((B, O), jnp.float32),
        grid=(n_o,),
        in_specs=[
            pl.BlockSpec((B, H), lambda j: (0, 0)),                         # h (bf16, resident)
            pl.BlockSpec((pl.Squeezed(), H, tO), lambda j: (j, 0, 0)),      # fc weight slab
            pl.BlockSpec((pl.Squeezed(), 1, tO), lambda j: (j, 0, 0)),      # fc bias slab
        ],
        out_specs=pl.BlockSpec((B, tO), lambda j: (0, j)),
        compiler_params=pltpu.CompilerParams(
            dimension_semantics=("parallel",),
            vmem_limit_bytes=vmem_limit),
        cost_estimate=fc_cost,
    )(h_lp, w_fc, b_fc)

    return pred, h_new[None, ...], c_new[None, ...]


# ----------------------------------------------------------------------------
# Pure-JAX reference (f32, PyTorch layout) for validation
# ----------------------------------------------------------------------------

def decoder_reference(tokens, hidden, cell, raw):
    x = raw["embedding"][tokens]                       # [B, E]
    h0, c0 = hidden[0], cell[0]
    H = h0.shape[1]
    gates = x @ raw["w_ih"].T + h0 @ raw["w_hh"].T + raw["b_ih"] + raw["b_hh"]
    i = jax.nn.sigmoid(gates[:, 0 * H:1 * H])
    f = jax.nn.sigmoid(gates[:, 1 * H:2 * H])
    g = jnp.tanh(gates[:, 2 * H:3 * H])
    o = jax.nn.sigmoid(gates[:, 3 * H:4 * H])
    c_new = f * c0 + i * g
    h_new = o * jnp.tanh(c_new)
    pred = h_new @ raw["w_fc"].T + raw["b_fc"]
    return pred, h_new[None, ...], c_new[None, ...]


if __name__ == "__main__":
    # Small shapes consistent with the module (original: emb_dim=2048, hid_dim=4096).
    # H >= 2*tH and O >= 2*tO so tile interleaving and multi-tile grids are exercised.
    OUTPUT_DIM = 512
    EMB_DIM = 128
    HID_DIM = 256
    BATCH = 8

    key = jax.random.PRNGKey(0)
    kp, kt, kh, kc = jax.random.split(key, 4)

    raw = init_raw_params(kp, OUTPUT_DIM, EMB_DIM, HID_DIM)
    params = prepare_params(raw, EMB_DIM, HID_DIM, max_tile_h=128, max_tile_o=256)
    assert params["w_gates"].shape[0] >= 2, "multi-tile H grid not exercised"
    assert params["w_fc"].shape[0] >= 2, "multi-tile O grid not exercised"

    tokens = jax.random.randint(kt, (BATCH,), 0, OUTPUT_DIM, dtype=jnp.int32)
    hidden = jax.random.normal(kh, (1, BATCH, HID_DIM), jnp.float32)
    cell = jax.random.normal(kc, (1, BATCH, HID_DIM), jnp.float32)

    pred, h_new, c_new = decoder_forward(tokens, hidden, cell, params)
    jax.block_until_ready((pred, h_new, c_new))

    assert pred.shape == (BATCH, OUTPUT_DIM)
    assert h_new.shape == (1, BATCH, HID_DIM)
    assert c_new.shape == (1, BATCH, HID_DIM)

    # Validate against the f32 reference (bf16 weights -> loose tolerance).
    pred_r, h_r, c_r = decoder_reference(tokens, hidden, cell, raw)
    assert jnp.allclose(pred, pred_r, atol=5e-2, rtol=5e-2)
    assert jnp.allclose(h_new, h_r, atol=5e-2, rtol=5e-2)
    assert jnp.allclose(c_new, c_r, atol=5e-2, rtol=5e-2)

    print("KERNEL_OK")
</pallas_src>

<mosaic_0001>
module attributes {stable_mosaic.version = 11 : i64} {
  func.func @lstm_gate_tile_kernel(%arg0: i32, %arg1: memref<8x384xbf16, #tpu.memory_space<vmem>>, %arg2: memref<8x128xf32, #tpu.memory_space<vmem>>, %arg3: memref<1x384x512xbf16, #tpu.memory_space<vmem>>, %arg4: memref<1x1x512xf32, #tpu.memory_space<vmem>>, %arg5: memref<8x128xf32, #tpu.memory_space<vmem>>, %arg6: memref<8x128xf32, #tpu.memory_space<vmem>>, %arg7: memref<8x128xbf16, #tpu.memory_space<vmem>>) attributes {dimension_semantics = [#tpu.dimension_semantics<parallel>], iteration_bounds = array<i64: 2>, scalar_prefetch = 0 : i64, scratch_operands = 0 : i64, tpu.core_type = #tpu.core_type<tc>, window_params = [{pipeline_mode = #tpu.pipeline_mode<synchronous>, transform_indices = @transform_0, window_bounds = array<i64: 8, 384>}, {transform_indices = @transform_1, window_bounds = array<i64: 8, 128>}, {transform_indices = @transform_2, window_bounds = array<i64: 1, 384, 512>}, {transform_indices = @transform_3, window_bounds = array<i64: 1, 1, 512>}, {transform_indices = @transform_4, window_bounds = array<i64: 8, 128>}, {transform_indices = @transform_5, window_bounds = array<i64: 8, 128>}, {transform_indices = @transform_6, window_bounds = array<i64: 8, 128>}]} {
    %c0 = arith.constant 0 : index
    %c0_0 = arith.constant 0 : index
    %0 = vector.load %arg1[%c0, %c0_0] : memref<8x384xbf16, #tpu.memory_space<vmem>>, vector<8x384xbf16>
    %c0_1 = arith.constant 0 : index
    %c0_2 = arith.constant 0 : index
    %c0_3 = arith.constant 0 : index
    %1 = vector.load %arg3[%c0_1, %c0_2, %c0_3] : memref<1x384x512xbf16, #tpu.memory_space<vmem>>, vector<1x384x512xbf16>
    %2 = vector.shape_cast %1 : vector<1x384x512xbf16> to vector<384x512xbf16>
    %cst = arith.constant dense<0.000000e+00> : vector<8x512xf32>
    %3 = tpu.matmul %0, %2, %cst {dimension_numbers = #tpu.dot_dimension_numbers<[1], [0], [0], [1], [0, 0, 1, 1], [], []>} : vector<8x384xbf16>, vector<384x512xbf16>, vector<8x512xf32> -> vector<8x512xf32>
    %c0_4 = arith.constant 0 : index
    %c0_5 = arith.constant 0 : index
    %c0_6 = arith.constant 0 : index
    %4 = vector.load %arg4[%c0_4, %c0_5, %c0_6] : memref<1x1x512xf32, #tpu.memory_space<vmem>>, vector<1x1x512xf32>
    %5 = vector.shape_cast %4 : vector<1x1x512xf32> to vector<1x512xf32>
    %6 = vector.broadcast %5 : vector<1x512xf32> to vector<8x512xf32>
    %7 = arith.addf %3, %6 : vector<8x512xf32>
    %8 = vector.extract_strided_slice %7 {offsets = [0, 0], sizes = [8, 128], strides = [1, 1]} : vector<8x512xf32> to vector<8x128xf32>
    %9 = arith.negf %8 : vector<8x128xf32>
    %10 = math.exp %9 : vector<8x128xf32>
    %cst_7 = arith.constant 1.000000e+00 : f32
    %11 = vector.broadcast %cst_7 : f32 to vector<8x128xf32>
    %12 = arith.addf %11, %10 : vector<8x128xf32>
    %13 = arith.divf %11, %12 : vector<8x128xf32>
    %14 = vector.extract_strided_slice %7 {offsets = [0, 128], sizes = [8, 128], strides = [1, 1]} : vector<8x512xf32> to vector<8x128xf32>
    %15 = arith.negf %14 : vector<8x128xf32>
    %16 = math.exp %15 : vector<8x128xf32>
    %cst_8 = arith.constant 1.000000e+00 : f32
    %17 = vector.broadcast %cst_8 : f32 to vector<8x128xf32>
    %18 = arith.addf %17, %16 : vector<8x128xf32>
    %19 = arith.divf %17, %18 : vector<8x128xf32>
    %20 = vector.extract_strided_slice %7 {offsets = [0, 256], sizes = [8, 128], strides = [1, 1]} : vector<8x512xf32> to vector<8x128xf32>
    %21 = math.tanh %20 : vector<8x128xf32>
    %22 = vector.extract_strided_slice %7 {offsets = [0, 384], sizes = [8, 128], strides = [1, 1]} : vector<8x512xf32> to vector<8x128xf32>
    %23 = arith.negf %22 : vector<8x128xf32>
    %24 = math.exp %23 : vector<8x128xf32>
    %cst_9 = arith.constant 1.000000e+00 : f32
    %25 = vector.broadcast %cst_9 : f32 to vector<8x128xf32>
    %26 = arith.addf %25, %24 : vector<8x128xf32>
    %27 = arith.divf %25, %26 : vector<8x128xf32>
    %c0_10 = arith.constant 0 : index
    %c0_11 = arith.constant 0 : index
    %28 = vector.load %arg2[%c0_10, %c0_11] : memref<8x128xf32, #tpu.memory_space<vmem>>, vector<8x128xf32>
    %29 = arith.mulf %19, %28 : vector<8x128xf32>
    %30 = arith.mulf %13, %21 : vector<8x128xf32>
    %31 = arith.addf %29, %30 : vector<8x128xf32>
    %32 = math.tanh %31 : vector<8x128xf32>
    %33 = arith.mulf %27, %32 : vector<8x128xf32>
    %c0_12 = arith.constant 0 : index
    %c0_13 = arith.constant 0 : index
    %34 = vector.load %arg6[%c0_12, %c0_13] : memref<8x128xf32, #tpu.memory_space<vmem>>, vector<8x128xf32>
    tpu.vector_store %arg6[%c0_12, %c0_13], %31 {strides = array<i32>} : memref<8x128xf32, #tpu.memory_space<vmem>>, vector<8x128xf32>,
    %c0_14 = arith.constant 0 : index
    %c0_15 = arith.constant 0 : index
    %35 = vector.load %arg5[%c0_14, %c0_15] : memref<8x128xf32, #tpu.memory_space<vmem>>, vector<8x128xf32>
    tpu.vector_store %arg5[%c0_14, %c0_15], %33 {strides = array<i32>} : memref<8x128xf32, #tpu.memory_space<vmem>>, vector<8x128xf32>,
    %36 = arith.truncf %33 : vector<8x128xf32> to vector<8x128xbf16>
    %c0_16 = arith.constant 0 : index
    %c0_17 = arith.constant 0 : index
    %37 = vector.load %arg7[%c0_16, %c0_17] : memref<8x128xbf16, #tpu.memory_space<vmem>>, vector<8x128xbf16>
    tpu.vector_store %arg7[%c0_16, %c0_17], %36 {strides = array<i32>} : memref<8x128xbf16, #tpu.memory_space<vmem>>, vector<8x128xbf16>,
    return
  }
  func.func @transform_0(%arg0: i32) -> (i32, i32) {
    %c0_i32 = arith.constant 0 : i32
    %c0_i32_0 = arith.constant 0 : i32
    %c0_i32_1 = arith.constant 0 : i32
    return %c0_i32, %c0_i32_0 : i32, i32
  }
  func.func @transform_1(%arg0: i32) -> (i32, i32) {
    %c0_i32 = arith.constant 0 : i32
    %c0_i32_0 = arith.constant 0 : i32
    return %c0_i32, %arg0 : i32, i32
  }
  func.func @transform_2(%arg0: i32) -> (i32, i32, i32) {
    %c0_i32 = arith.constant 0 : i32
    %c0_i32_0 = arith.constant 0 : i32
    %c0_i32_1 = arith.constant 0 : i32
    return %arg0, %c0_i32, %c0_i32_0 : i32, i32, i32
  }
  func.func @transform_3(%arg0: i32) -> (i32, i32, i32) {
    %c0_i32 = arith.constant 0 : i32
    %c0_i32_0 = arith.constant 0 : i32
    %c0_i32_1 = arith.constant 0 : i32
    return %arg0, %c0_i32, %c0_i32_0 : i32, i32, i32
  }
  func.func @transform_4(%arg0: i32) -> (i32, i32) {
    %c0_i32 = arith.constant 0 : i32
    %c0_i32_0 = arith.constant 0 : i32
    return %c0_i32, %arg0 : i32, i32
  }
  func.func @transform_5(%arg0: i32) -> (i32, i32) {
    %c0_i32 = arith.constant 0 : i32
    %c0_i32_0 = arith.constant 0 : i32
    return %c0_i32, %arg0 : i32, i32
  }
  func.func @transform_6(%arg0: i32) -> (i32, i32) {
    %c0_i32 = arith.constant 0 : i32
    %c0_i32_0 = arith.constant 0 : i32
    return %c0_i32, %arg0 : i32, i32
  }
}

</mosaic_0001>

<llo_original>
// kernel: tpu_custom_call.1
$region0: #{tpu_custom_call.1}
  #allocation0 [shape = 'u32[]', space=smem, size = 0x4, offset = 0x4, fixed_abs, tag = 'smem constant byte address 0x4 - core index']
  #allocation1 [shape = 'u32[144,128]{1,0:T(1,128)}', space=vmem, size = 0x12000, scoped, tag = 'internal scratch']
  %s0 = inlined_call_operand.vmem [shape: bf16[8,384], index: 0, kind: input, shape index: {}]
  %s1 = inlined_call_operand.hbm [shape: f32[8,256], index: 1, kind: input, shape index: {}, may-alias: {1,5}]
  %s2 = inlined_call_operand.hbm [shape: bf16[2,384,512], index: 2, kind: input, shape index: {}]
  %s3 = inlined_call_operand.vmem [shape: f32[2,1,512], index: 3, kind: input, shape index: {}]
  %s4 = inlined_call_operand.hbm [shape: f32[8,256], index: 4, kind: output, shape index: {0}]
  %s5 = inlined_call_operand.hbm [shape: f32[8,256], index: 5, kind: output, shape index: {1}, may-alias: {1,5}]
  %s6 = inlined_call_operand.hbm [shape: bf16[8,256], index: 6, kind: output, shape index: {2}]
  %7 = xla_tuple %s4, %s5, %s6
  %s8 = sld [smem:[#allocation0]]
  $region73: #{tpu_custom_call.1} parent=0
    _
  %s10 = ssub.s32 1, %s8
  %s11 = scalar_select 0, %s10, %s8
  $region1: #{tpu_custom_call.1} parent=0
    #allocation2 [shape = 'u8[8192]{0}', space=vmem, size = 0x2000, scoped, tag = 'input window, operand 1']
    #allocation3 [shape = 's32[2]{0}', space=sflag, size = 0x8, scoped, tag = 'scoped memory for tpu_custom_call.1']
    #allocation4 [shape = 's32[2]{0}', space=sflag, size = 0x8, scoped, tag = 'scoped memory for tpu_custom_call.1']
    #allocation5 [shape = 'u8[786432]{0}', space=vmem, size = 0xc0000, scoped, tag = 'input window, operand 2']
    #allocation6 [shape = 's32[2]{0}', space=sflag, size = 0x8, scoped, tag = 'scoped memory for tpu_custom_call.1']
    #allocation7 [shape = 'u8[8192]{0}', space=vmem, size = 0x2000, scoped, tag = 'output window, operand 0']
    #allocation8 [shape = 'u8[8192]{0}', space=vmem, size = 0x2000, scoped, tag = 'output window, operand 1']
    #allocation9 [shape = 's32[2]{0}', space=sflag, size = 0x8, scoped, tag = 'scoped memory for tpu_custom_call.1']
    #allocation10 [shape = 'u8[4096]{0}', space=vmem, size = 0x1000, scoped, tag = 'output window, operand 2']
    %12 = vsyncpa [#allocation3], 0
    %s13 = scalar_lea.sflag [#allocation3], 1
    %14 = vsyncpa %s13, 0
    %15 = vsyncpa [#allocation6], 0
    %s16 = scalar_lea.sflag [#allocation6], 1
    %17 = vsyncpa %s16, 0
    %18 = vsyncpa [#allocation4], 0
    %s19 = scalar_lea.sflag [#allocation4], 1
    %20 = vsyncpa %s19, 0
    %21 = vsyncpa [#allocation9], 0
    %s22 = scalar_lea.sflag [#allocation9], 1
    %23 = vsyncpa %s22, 0
    loop: start=0, step=1, limit=4
    $region2: #{tpu_custom_call.1} parent=1 // loop_pre_header
      _
    $region3: #{tpu_custom_call.1} parent=1 // loop_header
      %s25 = sphi 0, %s29
      %p26 = scmp.ge.s32.totalorder %s25, 4
      %s33 = sphi 0, %s33
      %s35 = sphi 0, %s33
      %s36 = sphi 0, %s35
      %s50 = sphi 0, %s36
      %s56 = sphi 0, %s58
      %s59 = sphi 0, %s56
      %s60 = sphi 0, %s59
      %s76 = sphi 0, %s60
      %s82 = sphi 0, %s84
      %s85 = sphi 0, %s82
      %s86 = sphi 0, %s85
      %s102 = sphi 0, %s86
      %s108 = sphi 0, %s110
      %s111 = sphi 0, %s108
      %s112 = sphi 0, %s111
      %s128 = sphi 0, %s112
      %s134 = sphi 0, %s136
      %s137 = sphi 0, %s134
      %s138 = sphi 0, %s137
      %s154 = sphi 0, %s138
      %s160 = sphi 0, %s162
      %s163 = sphi 0, %s160
      %s164 = sphi 0, %s163
      %s180 = sphi 0, %s164
      %s186 = sphi 0, %s188
      %s189 = sphi 0, %s186
      %s190 = sphi 0, %s189
      %s206 = sphi 0, %s190
    $region4: #{tpu_custom_call.1} parent=1 // loop_header_branch
      %28 = sbr.rel (%p26) target = $region8
    $region5: #{tpu_custom_call.1} parent=1 // loop_body
      %s30 = ssub.s32 %s25, 1
      %s31 = ssub.s32 %s25, 2
      %s32 = sadd.s32 %s25, 1
      %s34 = sadd.s32 %s33, 1
      %p37 = scmp.eq.s32.totalorder %s25, 1
      %p38 = scmp.ne.s32.totalorder %s33, %s35
      %p39 = scmp.eq.s32.totalorder %s25, 0
      %p40 = por %p38, %p39
      %p41 = scmp.ne.s32.totalorder %s33, %s35
      %p42 = scmp.eq.s32.totalorder %s30, 1
      %p43 = por %p41, %p42
      %p44 = scmp.ne.s32.totalorder %s35, %s36
      %p45 = scmp.eq.s32.totalorder %s30, 0
      %p46 = por %p44, %p45
      %p47 = scmp.ne.s32.totalorder %s35, %s36
      %p48 = scmp.eq.s32.totalorder %s31, 1
      %p49 = por %p47, %p48
      %p51 = scmp.ne.s32.totalorder %s36, %s50
      %p52 = scmp.eq.s32.totalorder %s31, 0
      %p53 = por %p51, %p52
      %s54 = ssub.s32 %s25, %s32
      %p55 = scmp.eq.s32.totalorder %s54, 0
      %s57 = sadd.s32 %s56, 1
      %s58 = scalar_select %p55, %s56, %s57
      %p61 = pneg %p55
      %p62 = scmp.eq.s32.totalorder %s25, 1
      %p63 = por %p61, %p62
      %p64 = scmp.ne.s32.totalorder %s56, %s59
      %p65 = scmp.eq.s32.totalorder %s25, 0
      %p66 = por %p64, %p65
      %p67 = scmp.ne.s32.totalorder %s56, %s59
      %p68 = scmp.eq.s32.totalorder %s30, 1
      %p69 = por %p67, %p68
      %p70 = scmp.ne.s32.totalorder %s59, %s60
      %p71 = scmp.eq.s32.totalorder %s30, 0
      %p72 = por %p70, %p71
      %p73 = scmp.ne.s32.totalorder %s59, %s60
      %p74 = scmp.eq.s32.totalorder %s31, 1
      %p75 = por %p73, %p74
      %p77 = scmp.ne.s32.totalorder %s60, %s76
      %p78 = scmp.eq.s32.totalorder %s31, 0
      %p79 = por %p77, %p78
      %s80 = ssub.s32 %s25, %s32
      %p81 = scmp.eq.s32.totalorder %s80, 0
      %s83 = sadd.s32 %s82, 1
      %s84 = scalar_select %p81, %s82, %s83
      %p87 = pneg %p81
      %p88 = scmp.eq.s32.totalorder %s25, 1
      %p89 = por %p87, %p88
      %p90 = scmp.ne.s32.totalorder %s82, %s85
      %p91 = scmp.eq.s32.totalorder %s25, 0
      %p92 = por %p90, %p91
      %p93 = scmp.ne.s32.totalorder %s82, %s85
      %p94 = scmp.eq.s32.totalorder %s30, 1
      %p95 = por %p93, %p94
      %p96 = scmp.ne.s32.totalorder %s85, %s86
      %p97 = scmp.eq.s32.totalorder %s30, 0
      %p98 = por %p96, %p97
      %p99 = scmp.ne.s32.totalorder %s85, %s86
      %p100 = scmp.eq.s32.totalorder %s31, 1
      %p101 = por %p99, %p100
      %p103 = scmp.ne.s32.totalorder %s86, %s102
      %p104 = scmp.eq.s32.totalorder %s31, 0
      %p105 = por %p103, %p104
      %s106 = ssub.s32 %s25, %s32
      %p107 = scmp.eq.s32.totalorder %s106, 0
      %s109 = sadd.s32 %s108, 1
      %s110 = scalar_select %p107, %s108, %s109
      %p113 = pneg %p107
      %p114 = scmp.eq.s32.totalorder %s25, 1
      %p115 = por %p113, %p114
      %p116 = scmp.ne.s32.totalorder %s108, %s111
      %p117 = scmp.eq.s32.totalorder %s25, 0
      %p118 = por %p116, %p117
      %p119 = scmp.ne.s32.totalorder %s108, %s111
      %p120 = scmp.eq.s32.totalorder %s30, 1
      %p121 = por %p119, %p120
      %p122 = scmp.ne.s32.totalorder %s111, %s112
      %p123 = scmp.eq.s32.totalorder %s30, 0
      %p124 = por %p122, %p123
      %p125 = scmp.ne.s32.totalorder %s111, %s112
      %p126 = scmp.eq.s32.totalorder %s31, 1
      %p127 = por %p125, %p126
      %p129 = scmp.ne.s32.totalorder %s112, %s128
      %p130 = scmp.eq.s32.totalorder %s31, 0
      %p131 = por %p129, %p130
      %s132 = ssub.s32 %s25, %s32
      %p133 = scmp.eq.s32.totalorder %s132, 0
      %s135 = sadd.s32 %s134, 1
      %s136 = scalar_select %p133, %s134, %s135
      %p139 = pneg %p133
      %p140 = scmp.eq.s32.totalorder %s25, 1
      %p141 = por %p139, %p140
      %p142 = scmp.ne.s32.totalorder %s134, %s137
      %p143 = scmp.eq.s32.totalorder %s25, 0
      %p144 = por %p142, %p143
      %p145 = scmp.ne.s32.totalorder %s134, %s137
      %p146 = scmp.eq.s32.totalorder %s30, 1
      %p147 = por %p145, %p146
      %p148 = scmp.ne.s32.totalorder %s137, %s138
      %p149 = scmp.eq.s32.totalorder %s30, 0
      %p150 = por %p148, %p149
      %p151 = scmp.ne.s32.totalorder %s137, %s138
      %p152 = scmp.eq.s32.totalorder %s31, 1
      %p153 = por %p151, %p152
      %p155 = scmp.ne.s32.totalorder %s138, %s154
      %p156 = scmp.eq.s32.totalorder %s31, 0
      %p157 = por %p155, %p156
      %s158 = ssub.s32 %s25, %s32
      %p159 = scmp.eq.s32.totalorder %s158, 0
      %s161 = sadd.s32 %s160, 1
      %s162 = scalar_select %p159, %s160, %s161
      %p165 = pneg %p159
      %p166 = scmp.eq.s32.totalorder %s25, 1
      %p167 = por %p165, %p166
      %p168 = scmp.ne.s32.totalorder %s160, %s163
      %p169 = scmp.eq.s32.totalorder %s25, 0
      %p170 = por %p168, %p169
      %p171 = scmp.ne.s32.totalorder %s160, %s163
      %p172 = scmp.eq.s32.totalorder %s30, 1
      %p173 = por %p171, %p172
      %p174 = scmp.ne.s32.totalorder %s163, %s164
      %p175 = scmp.eq.s32.totalorder %s30, 0
      %p176 = por %p174, %p175
      %p177 = scmp.ne.s32.totalorder %s163, %s164
      %p178 = scmp.eq.s32.totalorder %s31, 1
      %p179 = por %p177, %p178
      %p181 = scmp.ne.s32.totalorder %s164, %s180
      %p182 = scmp.eq.s32.totalorder %s31, 0
      %p183 = por %p181, %p182
      %s184 = ssub.s32 %s25, %s32
      %p185 = scmp.eq.s32.totalorder %s184, 0
      %s187 = sadd.s32 %s186, 1
      %s188 = scalar_select %p185, %s186, %s187
      %p191 = pneg %p185
      %p192 = scmp.eq.s32.totalorder %s25, 1
      %p193 = por %p191, %p192
      %p194 = scmp.ne.s32.totalorder %s186, %s189
      %p195 = scmp.eq.s32.totalorder %s25, 0
      %p196 = por %p194, %p195
      %p197 = scmp.ne.s32.totalorder %s186, %s189
      %p198 = scmp.eq.s32.totalorder %s30, 1
      %p199 = por %p197, %p198
      %p200 = scmp.ne.s32.totalorder %s189, %s190
      %p201 = scmp.eq.s32.totalorder %s30, 0
      %p202 = por %p200, %p201
      %p203 = scmp.ne.s32.totalorder %s189, %s190
      %p204 = scmp.eq.s32.totalorder %s31, 1
      %p205 = por %p203, %p204
      %p207 = scmp.ne.s32.totalorder %s190, %s206
      %p208 = scmp.eq.s32.totalorder %s31, 0
      %p209 = por %p207, %p208
      %p210 = scmp.le.s32.totalorder 1, %s25
      %p211 = scmp.lt.s32.totalorder %s25, 3
      %p212 = pnand %p210, %p211
      %p213 = pneg %p212
      // Predicated region
      $region9: #{tpu_custom_call.1} parent=5 // pred_check
        _
      $region10: #{tpu_custom_call.1} parent=5 // pred_check_branch
        %215 = sbr.rel (%p212) target = $region12
      $region11: #{tpu_custom_call.1} parent=5 // pred_region
        %s216 = ssub.s32 %s25, 1
        // Predicated region
        $region13: #{tpu_custom_call.1} parent=11 // pred_check
          %p217 = pneg %p46
        $region14: #{tpu_custom_call.1} parent=11 // pred_check_branch
          %219 = sbr.rel (%p217) target = $region16
        $region15: #{tpu_custom_call.1} parent=11 // pred_region
          _
        $region16: #{tpu_custom_call.1} parent=11 // pred_fallthru
          _
      $region12: #{tpu_custom_call.1} parent=5 // pred_fallthru
        _
      %p220 = scmp.lt.s32.totalorder %s25, 2
      // Predicated region
      $region17: #{tpu_custom_call.1} parent=5 // pred_check
        %p221 = pneg %p220
      $region18: #{tpu_custom_call.1} parent=5 // pred_check_branch
        %223 = sbr.rel (%p221) target = $region20
      $region19: #{tpu_custom_call.1} parent=5 // pred_region
        // Predicated region
        $region21: #{tpu_custom_call.1} parent=19 // pred_check
          %p224 = pneg %p66
        $region22: #{tpu_custom_call.1} parent=19 // pred_check_branch
          %226 = sbr.rel (%p224) target = $region24
        $region23: #{tpu_custom_call.1} parent=19 // pred_region
          %s227 = sand.u32 %s56, 1
          %s228 = scalar_lea.sflag [#allocation3], %s227
          %s229 = sand.u32 %s56, 1
          %s230 = smul.addr %s229, 8
          %s231 = scalar_lea.vmem [#allocation2], %s230
          %s233 = ssub.s32 128, 128
          %234 = vsyncadd %s228, %s233
          %s235 = smul.addr %s25, 128
          %s236 = scalar_lea.hbm %s1, %s235
          %s238 = sshll.u32 %s231, 4
          %s239 = int_to_ptr.vmem [resolvable:$true] %s238
          %241 = dma.hbm_to_vmem [thread:$0]  %s236, 128, %s239, %s228
        $region24: #{tpu_custom_call.1} parent=19 // pred_fallthru
          _
        // Predicated region
        $region25: #{tpu_custom_call.1} parent=19 // pred_check
          %p242 = pneg %p92
        $region26: #{tpu_custom_call.1} parent=19 // pred_check_branch
          %244 = sbr.rel (%p242) target = $region28
        $region27: #{tpu_custom_call.1} parent=19 // pred_region
          %s245 = sand.u32 %s82, 1
          %s246 = scalar_lea.sflag [#allocation6], %s245
          %s247 = sand.u32 %s82, 1
          %s248 = smul.addr %s247, 768
          %s249 = scalar_lea.vmem [#allocation5], %s248
          %s251 = ssub.s32 12288, 12288
          %252 = vsyncadd %s246, %s251
          %s253 = smul.addr %s25, 192
          %s254 = smul.addr %s253, 64
          %s255 = scalar_lea.hbm %s2, %s254
          %s256 = sshll.u32 %s249, 4
          %s257 = int_to_ptr.vmem [resolvable:$true] %s256
          %262 = dma.hbm_to_vmem [thread:$0]  %s255, 12288, %s257, %s246, 256, 256, 16
        $region28: #{tpu_custom_call.1} parent=19 // pred_fallthru
          _
        // Predicated region
        $region29: #{tpu_custom_call.1} parent=19 // pred_check
          %p263 = pneg %p118
        $region30: #{tpu_custom_call.1} parent=19 // pred_check_branch
          %265 = sbr.rel (%p263) target = $region32
        $region31: #{tpu_custom_call.1} parent=19 // pred_region
          %p266 = scmp.lt.s32.totalorder %s25, 1
          %s267 = scalar_select %p266, %s25, 1
          %s268 = smul.addr %s267, 4
          %s269 = scalar_lea.vmem %s3, %s268
        $region32: #{tpu_custom_call.1} parent=19 // pred_fallthru
          _
      $region20: #{tpu_custom_call.1} parent=5 // pred_fallthru
        _
      %p270 = scmp.le.s32.totalorder 1, %s25
      %p271 = scmp.lt.s32.totalorder %s25, 3
      %p272 = pnand %p270, %p271
      %p273 = pneg %p272
      // Predicated region
      $region33: #{tpu_custom_call.1} parent=5 // pred_check
        _
      $region34: #{tpu_custom_call.1} parent=5 // pred_check_branch
        %275 = sbr.rel (%p272) target = $region36
      $region35: #{tpu_custom_call.1} parent=5 // pred_region
        %s276 = ssub.s32 %s25, 1
        %s277 = sand.u32 %s59, 1
        %s278 = scalar_lea.sflag [#allocation3], %s277
        %s279 = sand.u32 %s59, 1
        %s280 = smul.addr %s279, 8
        %s281 = scalar_lea.vmem [#allocation2], %s280
        // Predicated region
        $region37: #{tpu_custom_call.1} parent=35 // pred_check
          %p282 = pneg %p72
        $region38: #{tpu_custom_call.1} parent=35 // pred_check_branch
          %284 = sbr.rel (%p282) target = $region40
        $region39: #{tpu_custom_call.1} parent=35 // pred_region
          %285 = dma.done %s278, 128
        $region40: #{tpu_custom_call.1} parent=35 // pred_fallthru
          _
        %s286 = sand.u32 %s85, 1
        %s287 = scalar_lea.sflag [#allocation6], %s286
        %s288 = sand.u32 %s85, 1
        %s289 = smul.addr %s288, 768
        %s290 = scalar_lea.vmem [#allocation5], %s289
        // Predicated region
        $region41: #{tpu_custom_call.1} parent=35 // pred_check
          %p291 = pneg %p98
        $region42: #{tpu_custom_call.1} parent=35 // pred_check_branch
          %293 = sbr.rel (%p291) target = $region44
        $region43: #{tpu_custom_call.1} parent=35 // pred_region
          %294 = dma.done %s287, 12288
        $region44: #{tpu_custom_call.1} parent=35 // pred_fallthru
          _
        %p295 = pneg %p46
        %p296 = pneg %p43
        %s297 = sand.u32 %s59, 1
        %s298 = scalar_lea.sflag [#allocation3], %s297
        %s299 = sand.u32 %s59, 1
        %s300 = smul.addr %s299, 8
        %s301 = scalar_lea.vmem [#allocation2], %s300
        %p302 = pneg %p72
        %p303 = pneg %p69
        %s304 = sand.u32 %s85, 1
        %s305 = scalar_lea.sflag [#allocation6], %s304
        %s306 = sand.u32 %s85, 1
        %s307 = smul.addr %s306, 768
        %s308 = scalar_lea.vmem [#allocation5], %s307
        %p309 = pneg %p98
        %p310 = pneg %p95
        %p311 = scmp.lt.s32.totalorder %s30, 1
        %s312 = scalar_select %p311, %s30, 1
        %s313 = smul.addr %s312, 4
        %s314 = scalar_lea.vmem %s3, %s313
        %p315 = pneg %p124
        %p316 = pneg %p121
        %p317 = pneg %p150
        %p318 = pneg %p147
        %s319 = sand.u32 %s137, 1
        %s320 = scalar_lea.sflag [#allocation4], %s319
        %s321 = sand.u32 %s137, 1
        %s322 = smul.addr %s321, 8
        %s323 = scalar_lea.vmem [#allocation7], %s322
        %p324 = pneg %p176
        %p325 = pneg %p173
        %s326 = sand.u32 %s30, 1
        %s327 = scalar_lea.sflag [#allocation9], %s326
        %s328 = sand.u32 %s163, 1
        %s329 = smul.addr %s328, 8
        %s330 = scalar_lea.vmem [#allocation8], %s329
        %p331 = pneg %p202
        %p332 = pneg %p199
        %s333 = sand.u32 %s30, 1
        %s334 = scalar_lea.sflag [#allocation9], %s333
        %s335 = sand.u32 %s189, 1
        %s336 = smul.addr %s335, 4
        %s337 = scalar_lea.vmem [#allocation10], %s336
        %p338 = scmp.lt.s32.totalorder %s30, 1
        %s339 = scalar_select %p338, %s30, 1
        %s340 = smul.addr %s339, 4
        %s341 = scalar_lea.vmem %s3, %s340
        %v343 = vld [vmem:[%s0] sm:$0xff]
        %v344 = vld [vmem:[%s0 + $0x8] sm:$0xf]
        %v345 = vld [vmem:[%s290] sm:$0xff]
        %v346 = vld [vmem:[%s290 + $0x8] sm:$0xff]
        %v347 = vld [vmem:[%s290 + $0x10] sm:$0xff]
        %v348 = vld [vmem:[%s290 + $0x18] sm:$0xff]
        %v349 = vld [vmem:[%s290 + $0x20] sm:$0xff]
        %v350 = vld [vmem:[%s290 + $0x28] sm:$0xff]
        %v351 = vld [vmem:[%s290 + $0x30] sm:$0xff]
        %v352 = vld [vmem:[%s290 + $0x38] sm:$0xff]
        %v353 = vld [vmem:[%s290 + $0x40] sm:$0xff]
        %v354 = vld [vmem:[%s290 + $0x48] sm:$0xff]
        %v355 = vld [vmem:[%s290 + $0x50] sm:$0xff]
        %v356 = vld [vmem:[%s290 + $0x58] sm:$0xff]
        %v357 = vld [vmem:[%s290 + $0x60] sm:$0xff]
        %v358 = vld [vmem:[%s290 + $0x68] sm:$0xff]
        %v359 = vld [vmem:[%s290 + $0x70] sm:$0xff]
        %v360 = vld [vmem:[%s290 + $0x78] sm:$0xff]
        %v361 = vld [vmem:[%s290 + $0x80] sm:$0xff]
        %v362 = vld [vmem:[%s290 + $0x88] sm:$0xff]
        %v363 = vld [vmem:[%s290 + $0x90] sm:$0xff]
        %v364 = vld [vmem:[%s290 + $0x98] sm:$0xff]
        %v365 = vld [vmem:[%s290 + $0xa0] sm:$0xff]
        %v366 = vld [vmem:[%s290 + $0xa8] sm:$0xff]
        %v367 = vld [vmem:[%s290 + $0xb0] sm:$0xff]
        %v368 = vld [vmem:[%s290 + $0xb8] sm:$0xff]
        %v369 = vld [vmem:[%s290 + $0xc0] sm:$0xff]
        %v370 = vld [vmem:[%s290 + $0xc8] sm:$0xff]
        %v371 = vld [vmem:[%s290 + $0xd0] sm:$0xff]
        %v372 = vld [vmem:[%s290 + $0xd8] sm:$0xff]
        %v373 = vld [vmem:[%s290 + $0xe0] sm:$0xff]
        %v374 = vld [vmem:[%s290 + $0xe8] sm:$0xff]
        %v375 = vld [vmem:[%s290 + $0xf0] sm:$0xff]
        %v376 = vld [vmem:[%s290 + $0xf8] sm:$0xff]
        %v377 = vld [vmem:[%s290 + $0x100] sm:$0xff]
        %v378 = vld [vmem:[%s290 + $0x108] sm:$0xff]
        %v379 = vld [vmem:[%s290 + $0x110] sm:$0xff]
        %v380 = vld [vmem:[%s290 + $0x118] sm:$0xff]
        %v381 = vld [vmem:[%s290 + $0x120] sm:$0xff]
        %v382 = vld [vmem:[%s290 + $0x128] sm:$0xff]
        %v383 = vld [vmem:[%s290 + $0x130] sm:$0xff]
        %v384 = vld [vmem:[%s290 + $0x138] sm:$0xff]
        %v385 = vld [vmem:[%s290 + $0x140] sm:$0xff]
        %v386 = vld [vmem:[%s290 + $0x148] sm:$0xff]
        %v387 = vld [vmem:[%s290 + $0x150] sm:$0xff]
        %v388 = vld [vmem:[%s290 + $0x158] sm:$0xff]
        %v389 = vld [vmem:[%s290 + $0x160] sm:$0xff]
        %v390 = vld [vmem:[%s290 + $0x168] sm:$0xff]
        %v391 = vld [vmem:[%s290 + $0x170] sm:$0xff]
        %v392 = vld [vmem:[%s290 + $0x178] sm:$0xff]
        %v393 = vld [vmem:[%s290 + $0x180] sm:$0xff]
        %v394 = vld [vmem:[%s290 + $0x188] sm:$0xff]
        %v395 = vld [vmem:[%s290 + $0x190] sm:$0xff]
        %v396 = vld [vmem:[%s290 + $0x198] sm:$0xff]
        %v397 = vld [vmem:[%s290 + $0x1a0] sm:$0xff]
        %v398 = vld [vmem:[%s290 + $0x1a8] sm:$0xff]
        %v399 = vld [vmem:[%s290 + $0x1b0] sm:$0xff]
        %v400 = vld [vmem:[%s290 + $0x1b8] sm:$0xff]
        %v401 = vld [vmem:[%s290 + $0x1c0] sm:$0xff]
        %v402 = vld [vmem:[%s290 + $0x1c8] sm:$0xff]
        %v403 = vld [vmem:[%s290 + $0x1d0] sm:$0xff]
        %v404 = vld [vmem:[%s290 + $0x1d8] sm:$0xff]
        %v405 = vld [vmem:[%s290 + $0x1e0] sm:$0xff]
        %v406 = vld [vmem:[%s290 + $0x1e8] sm:$0xff]
        %v407 = vld [vmem:[%s290 + $0x1f0] sm:$0xff]
        %v408 = vld [vmem:[%s290 + $0x1f8] sm:$0xff]
        %v409 = vld [vmem:[%s290 + $0x200] sm:$0xff]
        %v410 = vld [vmem:[%s290 + $0x208] sm:$0xff]
        %v411 = vld [vmem:[%s290 + $0x210] sm:$0xff]
        %v412 = vld [vmem:[%s290 + $0x218] sm:$0xff]
        %v413 = vld [vmem:[%s290 + $0x220] sm:$0xff]
        %v414 = vld [vmem:[%s290 + $0x228] sm:$0xff]
        %v415 = vld [vmem:[%s290 + $0x230] sm:$0xff]
        %v416 = vld [vmem:[%s290 + $0x238] sm:$0xff]
        %v417 = vld [vmem:[%s290 + $0x240] sm:$0xff]
        %v418 = vld [vmem:[%s290 + $0x248] sm:$0xff]
        %v419 = vld [vmem:[%s290 + $0x250] sm:$0xff]
        %v420 = vld [vmem:[%s290 + $0x258] sm:$0xff]
        %v421 = vld [vmem:[%s290 + $0x260] sm:$0xff]
        %v422 = vld [vmem:[%s290 + $0x268] sm:$0xff]
        %v423 = vld [vmem:[%s290 + $0x270] sm:$0xff]
        %v424 = vld [vmem:[%s290 + $0x278] sm:$0xff]
        %v425 = vld [vmem:[%s290 + $0x280] sm:$0xff]
        %v426 = vld [vmem:[%s290 + $0x288] sm:$0xff]
        %v427 = vld [vmem:[%s290 + $0x290] sm:$0xff]
        %v428 = vld [vmem:[%s290 + $0x298] sm:$0xff]
        %v429 = vld [vmem:[%s290 + $0x2a0] sm:$0xff]
        %v430 = vld [vmem:[%s290 + $0x2a8] sm:$0xff]
        %v431 = vld [vmem:[%s290 + $0x2b0] sm:$0xff]
        %v432 = vld [vmem:[%s290 + $0x2b8] sm:$0xff]
        %v433 = vld [vmem:[%s290 + $0x2c0] sm:$0xff]
        %v434 = vld [vmem:[%s290 + $0x2c8] sm:$0xff]
        %v435 = vld [vmem:[%s290 + $0x2d0] sm:$0xff]
        %v436 = vld [vmem:[%s290 + $0x2d8] sm:$0xff]
        %v437 = vld [vmem:[%s290 + $0x2e0] sm:$0xff]
        %v438 = vld [vmem:[%s290 + $0x2e8] sm:$0xff]
        %v439 = vld [vmem:[%s290 + $0x2f0] sm:$0xff]
        %v440 = vld [vmem:[%s290 + $0x2f8] sm:$0xff]
        %v441 = vld [vmem:[%s341] sm:$0xf]
        %v443 = vlaneseq
        %v444 = vshrl.u32 %v443, 7
        %v445 = vsub.s32 0, %v444
        %v446 = vrot.slane %v441, %v445
        %v447 = vlaneseq
        %v448 = vshrl.u32 %v447, 7
        %v449 = vsub.s32 1, %v448
        %v450 = vrot.slane %v441, %v449
        %v451 = vlaneseq
        %v452 = vshrl.u32 %v451, 7
        %v453 = vsub.s32 2, %v452
        %v454 = vrot.slane %v441, %v453
        %v455 = vlaneseq
        %v456 = vshrl.u32 %v455, 7
        %v457 = vsub.s32 3, %v456
        %v458 = vrot.slane %v441, %v457
        %v465 = vunpack.c.l.b16 %v343
        %v466 = vunpack.c.h.b16 %v343
        %v467 = vunpack.c.l.b16 %v344
        %v468 = vpack.c.b16 %v465, %v465
        %v469 = vpack.c.b16 %v466, %v466
        %v470 = vpack.c.b16 %v467, %v467
        %v570 = vunpack.c.l.b16 %v345
        %v571 = vunpack.c.h.b16 %v345
        %v572 = vunpack.c.l.b16 %v346
        %v573 = vunpack.c.h.b16 %v346
        %v574 = vunpack.c.l.b16 %v347
        %v575 = vunpack.c.h.b16 %v347
        %v576 = vunpack.c.l.b16 %v348
        %v577 = vunpack.c.h.b16 %v348
        %v578 = vunpack.c.l.b16 %v349
        %v579 = vunpack.c.h.b16 %v349
        %v580 = vunpack.c.l.b16 %v350
        %v581 = vunpack.c.h.b16 %v350
        %v582 = vunpack.c.l.b16 %v351
        %v583 = vunpack.c.h.b16 %v351
        %v584 = vunpack.c.l.b16 %v352
        %v585 = vunpack.c.h.b16 %v352
        %v586 = vunpack.c.l.b16 %v353
        %v587 = vunpack.c.h.b16 %v353
        %v588 = vunpack.c.l.b16 %v354
        %v589 = vunpack.c.h.b16 %v354
        %v590 = vunpack.c.l.b16 %v355
        %v591 = vunpack.c.h.b16 %v355
        %v592 = vunpack.c.l.b16 %v356
        %v593 = vunpack.c.h.b16 %v356
        %v594 = vunpack.c.l.b16 %v357
        %v595 = vunpack.c.h.b16 %v357
        %v596 = vunpack.c.l.b16 %v358
        %v597 = vunpack.c.h.b16 %v358
        %v598 = vunpack.c.l.b16 %v359
        %v599 = vunpack.c.h.b16 %v359
        %v600 = vunpack.c.l.b16 %v360
        %v601 = vunpack.c.h.b16 %v360
        %v602 = vunpack.c.l.b16 %v361
        %v603 = vunpack.c.h.b16 %v361
        %v604 = vunpack.c.l.b16 %v362
        %v605 = vunpack.c.h.b16 %v362
        %v606 = vunpack.c.l.b16 %v363
        %v607 = vunpack.c.h.b16 %v363
        %v608 = vunpack.c.l.b16 %v364
        %v609 = vunpack.c.h.b16 %v364
        %v610 = vunpack.c.l.b16 %v365
        %v611 = vunpack.c.h.b16 %v365
        %v612 = vunpack.c.l.b16 %v366
        %v613 = vunpack.c.h.b16 %v366
        %v614 = vunpack.c.l.b16 %v367
        %v615 = vunpack.c.h.b16 %v367
        %v616 = vunpack.c.l.b16 %v368
        %v617 = vunpack.c.h.b16 %v368
        %v618 = vunpack.c.l.b16 %v369
        %v619 = vunpack.c.h.b16 %v369
        %v620 = vunpack.c.l.b16 %v370
        %v621 = vunpack.c.h.b16 %v370
        %v622 = vunpack.c.l.b16 %v371
        %v623 = vunpack.c.h.b16 %v371
        %v624 = vunpack.c.l.b16 %v372
        %v625 = vunpack.c.h.b16 %v372
        %v626 = vunpack.c.l.b16 %v373
        %v627 = vunpack.c.h.b16 %v373
        %v628 = vunpack.c.l.b16 %v374
        %v629 = vunpack.c.h.b16 %v374
        %v630 = vunpack.c.l.b16 %v375
        %v631 = vunpack.c.h.b16 %v375
        %v632 = vunpack.c.l.b16 %v376
        %v633 = vunpack.c.h.b16 %v376
        %v634 = vunpack.c.l.b16 %v377
        %v635 = vunpack.c.h.b16 %v377
        %v636 = vunpack.c.l.b16 %v378
        %v637 = vunpack.c.h.b16 %v378
        %v638 = vunpack.c.l.b16 %v379
        %v639 = vunpack.c.h.b16 %v379
        %v640 = vunpack.c.l.b16 %v380
        %v641 = vunpack.c.h.b16 %v380
        %v642 = vunpack.c.l.b16 %v381
        %v643 = vunpack.c.h.b16 %v381
        %v644 = vunpack.c.l.b16 %v382
        %v645 = vunpack.c.h.b16 %v382
        %v646 = vunpack.c.l.b16 %v383
        %v647 = vunpack.c.h.b16 %v383
        %v648 = vunpack.c.l.b16 %v384
        %v649 = vunpack.c.h.b16 %v384
        %v650 = vunpack.c.l.b16 %v385
        %v651 = vunpack.c.h.b16 %v385
        %v652 = vunpack.c.l.b16 %v386
        %v653 = vunpack.c.h.b16 %v386
        %v654 = vunpack.c.l.b16 %v387
        %v655 = vunpack.c.h.b16 %v387
        %v656 = vunpack.c.l.b16 %v388
        %v657 = vunpack.c.h.b16 %v388
        %v658 = vunpack.c.l.b16 %v389
        %v659 = vunpack.c.h.b16 %v389
        %v660 = vunpack.c.l.b16 %v390
        %v661 = vunpack.c.h.b16 %v390
        %v662 = vunpack.c.l.b16 %v391
        %v663 = vunpack.c.h.b16 %v391
        %v664 = vunpack.c.l.b16 %v392
        %v665 = vunpack.c.h.b16 %v392
        %v666 = vunpack.c.l.b16 %v393
        %v667 = vunpack.c.h.b16 %v393
        %v668 = vunpack.c.l.b16 %v394
        %v669 = vunpack.c.h.b16 %v394
        %v670 = vunpack.c.l.b16 %v395
        %v671 = vunpack.c.h.b16 %v395
        %v672 = vunpack.c.l.b16 %v396
        %v673 = vunpack.c.h.b16 %v396
        %v674 = vunpack.c.l.b16 %v397
        %v675 = vunpack.c.h.b16 %v397
        %v676 = vunpack.c.l.b16 %v398
        %v677 = vunpack.c.h.b16 %v398
        %v678 = vunpack.c.l.b16 %v399
        %v679 = vunpack.c.h.b16 %v399
        %v680 = vunpack.c.l.b16 %v400
        %v681 = vunpack.c.h.b16 %v400
        %v682 = vunpack.c.l.b16 %v401
        %v683 = vunpack.c.h.b16 %v401
        %v684 = vunpack.c.l.b16 %v402
        %v685 = vunpack.c.h.b16 %v402
        %v686 = vunpack.c.l.b16 %v403
        %v687 = vunpack.c.h.b16 %v403
        %v688 = vunpack.c.l.b16 %v404
        %v689 = vunpack.c.h.b16 %v404
        %v690 = vunpack.c.l.b16 %v405
        %v691 = vunpack.c.h.b16 %v405
        %v692 = vunpack.c.l.b16 %v406
        %v693 = vunpack.c.h.b16 %v406
        %v694 = vunpack.c.l.b16 %v407
        %v695 = vunpack.c.h.b16 %v407
        %v696 = vunpack.c.l.b16 %v408
        %v697 = vunpack.c.h.b16 %v408
        %v698 = vunpack.c.l.b16 %v409
        %v699 = vunpack.c.h.b16 %v409
        %v700 = vunpack.c.l.b16 %v410
        %v701 = vunpack.c.h.b16 %v410
        %v702 = vunpack.c.l.b16 %v411
        %v703 = vunpack.c.h.b16 %v411
        %v704 = vunpack.c.l.b16 %v412
        %v705 = vunpack.c.h.b16 %v412
        %v706 = vunpack.c.l.b16 %v413
        %v707 = vunpack.c.h.b16 %v413
        %v708 = vunpack.c.l.b16 %v414
        %v709 = vunpack.c.h.b16 %v414
        %v710 = vunpack.c.l.b16 %v415
        %v711 = vunpack.c.h.b16 %v415
        %v712 = vunpack.c.l.b16 %v416
        %v713 = vunpack.c.h.b16 %v416
        %v714 = vunpack.c.l.b16 %v417
        %v715 = vunpack.c.h.b16 %v417
        %v716 = vunpack.c.l.b16 %v418
        %v717 = vunpack.c.h.b16 %v418
        %v718 = vunpack.c.l.b16 %v419
        %v719 = vunpack.c.h.b16 %v419
        %v720 = vunpack.c.l.b16 %v420
        %v721 = vunpack.c.h.b16 %v420
        %v722 = vunpack.c.l.b16 %v421
        %v723 = vunpack.c.h.b16 %v421
        %v724 = vunpack.c.l.b16 %v422
        %v725 = vunpack.c.h.b16 %v422
        %v726 = vunpack.c.l.b16 %v423
        %v727 = vunpack.c.h.b16 %v423
        %v728 = vunpack.c.l.b16 %v424
        %v729 = vunpack.c.h.b16 %v424
        %v730 = vunpack.c.l.b16 %v425
        %v731 = vunpack.c.h.b16 %v425
        %v732 = vunpack.c.l.b16 %v426
        %v733 = vunpack.c.h.b16 %v426
        %v734 = vunpack.c.l.b16 %v427
        %v735 = vunpack.c.h.b16 %v427
        %v736 = vunpack.c.l.b16 %v428
        %v737 = vunpack.c.h.b16 %v428
        %v738 = vunpack.c.l.b16 %v429
        %v739 = vunpack.c.h.b16 %v429
        %v740 = vunpack.c.l.b16 %v430
        %v741 = vunpack.c.h.b16 %v430
        %v742 = vunpack.c.l.b16 %v431
        %v743 = vunpack.c.h.b16 %v431
        %v744 = vunpack.c.l.b16 %v432
        %v745 = vunpack.c.h.b16 %v432
        %v746 = vunpack.c.l.b16 %v433
        %v747 = vunpack.c.h.b16 %v433
        %v748 = vunpack.c.l.b16 %v434
        %v749 = vunpack.c.h.b16 %v434
        %v750 = vunpack.c.l.b16 %v435
        %v751 = vunpack.c.h.b16 %v435
        %v752 = vunpack.c.l.b16 %v436
        %v753 = vunpack.c.h.b16 %v436
        %v754 = vunpack.c.l.b16 %v437
        %v755 = vunpack.c.h.b16 %v437
        %v756 = vunpack.c.l.b16 %v438
        %v757 = vunpack.c.h.b16 %v438
        %v758 = vunpack.c.l.b16 %v439
        %v759 = vunpack.c.h.b16 %v439
        %v760 = vunpack.c.l.b16 %v440
        %v761 = vunpack.c.h.b16 %v440
        %v762 = vpack.c.b16 %v574, %v570
        %v763 = vpack.c.b16 %v575, %v571
        %v764 = vpack.c.b16 %v576, %v572
        %v765 = vpack.c.b16 %v577, %v573
        %v766 = vpack.c.b16 %v582, %v578
        %v767 = vpack.c.b16 %v583, %v579
        %v768 = vpack.c.b16 %v584, %v580
        %v769 = vpack.c.b16 %v585, %v581
        %v770 = vpack.c.b16 %v590, %v586
        %v771 = vpack.c.b16 %v591, %v587
        %v772 = vpack.c.b16 %v592, %v588
        %v773 = vpack.c.b16 %v593, %v589
        %v774 = vpack.c.b16 %v598, %v594
        %v775 = vpack.c.b16 %v599, %v595
        %v776 = vpack.c.b16 %v600, %v596
        %v777 = vpack.c.b16 %v601, %v597
        %v778 = vpack.c.b16 %v606, %v602
        %v779 = vpack.c.b16 %v607, %v603
        %v780 = vpack.c.b16 %v608, %v604
        %v781 = vpack.c.b16 %v609, %v605
        %v782 = vpack.c.b16 %v614, %v610
        %v783 = vpack.c.b16 %v615, %v611
        %v784 = vpack.c.b16 %v616, %v612
        %v785 = vpack.c.b16 %v617, %v613
        %v786 = vpack.c.b16 %v622, %v618
        %v787 = vpack.c.b16 %v623, %v619
        %v788 = vpack.c.b16 %v624, %v620
        %v789 = vpack.c.b16 %v625, %v621
        %v790 = vpack.c.b16 %v630, %v626
        %v791 = vpack.c.b16 %v631, %v627
        %v792 = vpack.c.b16 %v632, %v628
        %v793 = vpack.c.b16 %v633, %v629
        %v794 = vpack.c.b16 %v638, %v634
        %v795 = vpack.c.b16 %v639, %v635
        %v796 = vpack.c.b16 %v640, %v636
        %v797 = vpack.c.b16 %v641, %v637
        %v798 = vpack.c.b16 %v646, %v642
        %v799 = vpack.c.b16 %v647, %v643
        %v800 = vpack.c.b16 %v648, %v644
        %v801 = vpack.c.b16 %v649, %v645
        %v802 = vpack.c.b16 %v654, %v650
        %v803 = vpack.c.b16 %v655, %v651
        %v804 = vpack.c.b16 %v656, %v652
        %v805 = vpack.c.b16 %v657, %v653
        %v806 = vpack.c.b16 %v662, %v658
        %v807 = vpack.c.b16 %v663, %v659
        %v808 = vpack.c.b16 %v664, %v660
        %v809 = vpack.c.b16 %v665, %v661
        %v810 = vpack.c.b16 %v670, %v666
        %v811 = vpack.c.b16 %v671, %v667
        %v812 = vpack.c.b16 %v672, %v668
        %v813 = vpack.c.b16 %v673, %v669
        %v814 = vpack.c.b16 %v678, %v674
        %v815 = vpack.c.b16 %v679, %v675
        %v816 = vpack.c.b16 %v680, %v676
        %v817 = vpack.c.b16 %v681, %v677
        %v818 = vpack.c.b16 %v686, %v682
        %v819 = vpack.c.b16 %v687, %v683
        %v820 = vpack.c.b16 %v688, %v684
        %v821 = vpack.c.b16 %v689, %v685
        %v822 = vpack.c.b16 %v694, %v690
        %v823 = vpack.c.b16 %v695, %v691
        %v824 = vpack.c.b16 %v696, %v692
        %v825 = vpack.c.b16 %v697, %v693
        %v826 = vpack.c.b16 %v702, %v698
        %v827 = vpack.c.b16 %v703, %v699
        %v828 = vpack.c.b16 %v704, %v700
        %v829 = vpack.c.b16 %v705, %v701
        %v830 = vpack.c.b16 %v710, %v706
        %v831 = vpack.c.b16 %v711, %v707
        %v832 = vpack.c.b16 %v712, %v708
        %v833 = vpack.c.b16 %v713, %v709
        %v834 = vpack.c.b16 %v718, %v714
        %v835 = vpack.c.b16 %v719, %v715
        %v836 = vpack.c.b16 %v720, %v716
        %v837 = vpack.c.b16 %v721, %v717
        %v838 = vpack.c.b16 %v726, %v722
        %v839 = vpack.c.b16 %v727, %v723
        %v840 = vpack.c.b16 %v728, %v724
        %v841 = vpack.c.b16 %v729, %v725
        %v842 = vpack.c.b16 %v734, %v730
        %v843 = vpack.c.b16 %v735, %v731
        %v844 = vpack.c.b16 %v736, %v732
        %v845 = vpack.c.b16 %v737, %v733
        %v846 = vpack.c.b16 %v742, %v738
        %v847 = vpack.c.b16 %v743, %v739
        %v848 = vpack.c.b16 %v744, %v740
        %v849 = vpack.c.b16 %v745, %v741
        %v850 = vpack.c.b16 %v750, %v746
        %v851 = vpack.c.b16 %v751, %v747
        %v852 = vpack.c.b16 %v752, %v748
        %v853 = vpack.c.b16 %v753, %v749
        %v854 = vpack.c.b16 %v758, %v754
        %v855 = vpack.c.b16 %v759, %v755
        %v856 = vpack.c.b16 %v760, %v756
        %v857 = vpack.c.b16 %v761, %v757
        %954 = vmatprep.subr.bf16.mxu0 %v763
        %955 = vmatpush1.bf16.msra.mxu0 %v762
        %956 = vmatprep.subr.bf16.mxu0 %v767
        %957 = vmatpush1.bf16.msra.mxu0 %v766
        %958 = vmatprep.subr.bf16.mxu0 %v771
        %959 = vmatpush1.bf16.msra.mxu0 %v770
        %960 = vmatprep.subr.bf16.mxu0 %v775
        %961 = vmatpush1.bf16.msra.mxu0 %v774
        %962 = vmatprep.subr.bf16.mxu0 %v779
        %963 = vmatpush1.bf16.msra.mxu0 %v778
        %964 = vmatprep.subr.bf16.mxu0 %v783
        %965 = vmatpush1.bf16.msra.mxu0 %v782
        %966 = vmatprep.subr.bf16.mxu0 %v787
        %967 = vmatpush1.bf16.msra.mxu0 %v786
        %968 = vmatprep.subr.bf16.mxu0 %v791
        %969 = vmatpush1.bf16.msra.mxu0 %v790
        %970 = vmatprep.subr.bf16.mxu0 %v795
        %971 = vmatpush1.bf16.msra.mxu0 %v794
        %972 = vmatprep.subr.bf16.mxu0 %v799
        %973 = vmatpush1.bf16.msra.mxu0 %v798
        %974 = vmatprep.subr.bf16.mxu0 %v803
        %975 = vmatpush1.bf16.msra.mxu0 %v802
        %976 = vmatprep.subr.bf16.mxu0 %v807
        %977 = vmatpush1.bf16.msra.mxu0 %v806
        %978 = vmatprep.subr.bf16.mxu0 %v811
        %979 = vmatpush1.bf16.msra.mxu0 %v810
        %980 = vmatprep.subr.bf16.mxu0 %v815
        %981 = vmatpush1.bf16.msra.mxu0 %v814
        %982 = vmatprep.subr.bf16.mxu0 %v819
        %983 = vmatpush1.bf16.msra.mxu0 %v818
        %984 = vmatprep.subr.bf16.mxu0 %v823
        %985 = vmatpush1.bf16.msra.mxu0 %v822
        %986 = vmatprep.mubr.bf16.mxu0 %v469
        %987 = vmatmul.mubr.bf16.gmra.mrb[0].mxu0 %v468
        %v988 = vpop.f32.mrb[0].mxu0
        %v989 = vadd.f32 %v446, %v988
        %v990 = vpop.f32.mrb[0].mxu0
        %v991 = vadd.f32 %v450, %v990
        %v992 = vpop.f32.mrb[0].mxu0
        %v993 = vpop.f32.mrb[0].mxu0
        %994 = vdwg.mxu0
        %995 = vmatprep.subr.bf16.mxu0 %v827
        %996 = vmatpush1.bf16.msra.mxu0 %v826
        %997 = vmatprep.subr.bf16.mxu0 %v831
        %998 = vmatpush1.bf16.msra.mxu0 %v830
        %999 = vmatprep.subr.bf16.mxu0 %v835
        %1000 = vmatpush1.bf16.msra.mxu0 %v834
        %1001 = vmatprep.subr.bf16.mxu0 %v839
        %1002 = vmatpush1.bf16.msra.mxu0 %v838
        %1003 = vmatprep.subr.bf16.mxu0 %v843
        %1004 = vmatpush1.bf16.msra.mxu0 %v842
        %1005 = vmatprep.subr.bf16.mxu0 %v847
        %1006 = vmatpush1.bf16.msra.mxu0 %v846
        %1007 = vmatprep.subr.bf16.mxu0 %v851
        %1008 = vmatpush1.bf16.msra.mxu0 %v850
        %1009 = vmatprep.subr.bf16.mxu0 %v855
        %1010 = vmatpush1.bf16.msra.mxu0 %v854
        %1011 = vmatprep.subr.bf16.mxu0 0
        %1012 = vmatpush1.bf16.msra.mxu0 0
        %1013 = vmatprep.subr.bf16.mxu0 0
        %1014 = vmatpush1.bf16.msra.mxu0 0
        %1015 = vmatprep.subr.bf16.mxu0 0
        %1016 = vmatpush1.bf16.msra.mxu0 0
        %1017 = vmatprep.subr.bf16.mxu0 0
        %1018 = vmatpush1.bf16.msra.mxu0 0
        %1019 = vmatprep.subr.bf16.mxu0 0
        %1020 = vmatpush1.bf16.msra.mxu0 0
        %1021 = vmatprep.subr.bf16.mxu0 0
        %1022 = vmatpush1.bf16.msra.mxu0 0
        %1023 = vmatprep.subr.bf16.mxu0 0
        %1024 = vmatpush1.bf16.msra.mxu0 0
        %1025 = vmatprep.subr.bf16.mxu0 0
        %1026 = vmatpush1.bf16.msra.mxu0 0
        %1027 = vmatprep.mubr.bf16.mxu0 0
        %1028 = vmatmul.mubr.bf16.gmra.mrb[0].mxu0 %v470
        %v1029 = vpop.f32.mrb[0].mxu0
        %v1030 = vadd.f32 %v989, %v1029
        %v1031 = vpop.f32.mrb[0].mxu0
        %v1032 = vadd.f32 %v991, %v1031
        %v1033 = vpop.f32.mrb[0].mxu0
        %v1034 = vpop.f32.mrb[0].mxu0
        %1035 = vdwg.mxu0
        %1036 = vmatprep.subr.bf16.mxu0 %v765
        %1037 = vmatpush1.bf16.msra.mxu0 %v764
        %1038 = vmatprep.subr.bf16.mxu0 %v769
        %1039 = vmatpush1.bf16.msra.mxu0 %v768
        %1040 = vmatprep.subr.bf16.mxu0 %v773
        %1041 = vmatpush1.bf16.msra.mxu0 %v772
        %1042 = vmatprep.subr.bf16.mxu0 %v777
        %1043 = vmatpush1.bf16.msra.mxu0 %v776
        %1044 = vmatprep.subr.bf16.mxu0 %v781
        %1045 = vmatpush1.bf16.msra.mxu0 %v780
        %1046 = vmatprep.subr.bf16.mxu0 %v785
        %1047 = vmatpush1.bf16.msra.mxu0 %v784
        %1048 = vmatprep.subr.bf16.mxu0 %v789
        %1049 = vmatpush1.bf16.msra.mxu0 %v788
        %1050 = vmatprep.subr.bf16.mxu0 %v793
        %1051 = vmatpush1.bf16.msra.mxu0 %v792
        %1052 = vmatprep.subr.bf16.mxu0 %v797
        %1053 = vmatpush1.bf16.msra.mxu0 %v796
        %1054 = vmatprep.subr.bf16.mxu0 %v801
        %1055 = vmatpush1.bf16.msra.mxu0 %v800
        %1056 = vmatprep.subr.bf16.mxu0 %v805
        %1057 = vmatpush1.bf16.msra.mxu0 %v804
        %1058 = vmatprep.subr.bf16.mxu0 %v809
        %1059 = vmatpush1.bf16.msra.mxu0 %v808
        %1060 = vmatprep.subr.bf16.mxu0 %v813
        %1061 = vmatpush1.bf16.msra.mxu0 %v812
        %1062 = vmatprep.subr.bf16.mxu0 %v817
        %1063 = vmatpush1.bf16.msra.mxu0 %v816
        %1064 = vmatprep.subr.bf16.mxu0 %v821
        %1065 = vmatpush1.bf16.msra.mxu0 %v820
        %1066 = vmatprep.subr.bf16.mxu0 %v825
        %1067 = vmatpush1.bf16.msra.mxu0 %v824
        %1068 = vmatprep.mubr.bf16.mxu0 %v469
        %1069 = vmatmul.mubr.bf16.gmra.mrb[0].mxu0 %v468
        %v1070 = vpop.f32.mrb[0].mxu0
        %v1071 = vadd.f32 %v454, %v1070
        %v1072 = vpop.f32.mrb[0].mxu0
        %v1073 = vadd.f32 %v458, %v1072
        %v1074 = vpop.f32.mrb[0].mxu0
        %v1075 = vpop.f32.mrb[0].mxu0
        %1076 = vdwg.mxu0
        %1077 = vmatprep.subr.bf16.mxu0 %v829
        %1078 = vmatpush1.bf16.msra.mxu0 %v828
        %1079 = vmatprep.subr.bf16.mxu0 %v833
        %1080 = vmatpush1.bf16.msra.mxu0 %v832
        %1081 = vmatprep.subr.bf16.mxu0 %v837
        %1082 = vmatpush1.bf16.msra.mxu0 %v836
        %1083 = vmatprep.subr.bf16.mxu0 %v841
        %1084 = vmatpush1.bf16.msra.mxu0 %v840
        %1085 = vmatprep.subr.bf16.mxu0 %v845
        %1086 = vmatpush1.bf16.msra.mxu0 %v844
        %1087 = vmatprep.subr.bf16.mxu0 %v849
        %1088 = vmatpush1.bf16.msra.mxu0 %v848
        %1089 = vmatprep.subr.bf16.mxu0 %v853
        %1090 = vmatpush1.bf16.msra.mxu0 %v852
        %1091 = vmatprep.subr.bf16.mxu0 %v857
        %1092 = vmatpush1.bf16.msra.mxu0 %v856
        %1093 = vmatprep.subr.bf16.mxu0 0
        %1094 = vmatpush1.bf16.msra.mxu0 0
        %1095 = vmatprep.subr.bf16.mxu0 0
        %1096 = vmatpush1.bf16.msra.mxu0 0
        %1097 = vmatprep.subr.bf16.mxu0 0
        %1098 = vmatpush1.bf16.msra.mxu0 0
        %1099 = vmatprep.subr.bf16.mxu0 0
        %1100 = vmatpush1.bf16.msra.mxu0 0
        %1101 = vmatprep.subr.bf16.mxu0 0
        %1102 = vmatpush1.bf16.msra.mxu0 0
        %1103 = vmatprep.subr.bf16.mxu0 0
        %1104 = vmatpush1.bf16.msra.mxu0 0
        %1105 = vmatprep.subr.bf16.mxu0 0
        %1106 = vmatpush1.bf16.msra.mxu0 0
        %1107 = vmatprep.subr.bf16.mxu0 0
        %1108 = vmatpush1.bf16.msra.mxu0 0
        %1109 = vmatprep.mubr.bf16.mxu0 0
        %1110 = vmatmul.mubr.bf16.gmra.mrb[0].mxu0 %v470
        %v1111 = vpop.f32.mrb[0].mxu0
        %v1112 = vadd.f32 %v1071, %v1111
        %v1113 = vpop.f32.mrb[0].mxu0
        %v1114 = vadd.f32 %v1073, %v1113
        %v1115 = vpop.f32.mrb[0].mxu0
        %v1116 = vpop.f32.mrb[0].mxu0
        %1117 = vdwg.mxu0
        %v1118 = vxor.u32 %v1030, 2147483648
        %v1119 = vmul.f32 %v1118, 1.442695
        %v1120 = vpow.pop %v1119
        %v1121 = vadd.f32 %v1120, 1.0
        %v1122 = vrcp.pop %v1121
        %v1123 = vmul.f32 1.0, %v1122
        %v1124 = vxor.u32 %v1032, 2147483648
        %v1125 = vmul.f32 %v1124, 1.442695
        %v1126 = vpow.pop %v1125
        %v1127 = vadd.f32 %v1126, 1.0
        %v1128 = vrcp.pop %v1127
        %v1129 = vmul.f32 1.0, %v1128
        %v1130 = vtanh.pop %v1112
        %v1131 = vxor.u32 %v1114, 2147483648
        %v1132 = vmul.f32 %v1131, 1.442695
        %v1133 = vpow.pop %v1132
        %v1134 = vadd.f32 %v1133, 1.0
        %v1135 = vrcp.pop %v1134
        %v1136 = vmul.f32 1.0, %v1135
        %v1137 = vld [vmem:[%s281] sm:$0xff]
        %v1138 = vmul.f32 %v1129, %v1137
        %v1139 = vmul.f32 %v1123, %v1130
        %v1140 = vadd.f32 %v1138, %v1139
        %v1141 = vtanh.pop %v1140
        %v1142 = vmul.f32 %v1136, %v1141
        %1143 = vst [vmem:[%s330] sm:$0xff] %v1140
        %1144 = vst [vmem:[%s323] sm:$0xff] %v1142
        %v1145 = vpack.c.bf16 %v1142, %v1142
        %1146 = vst [vmem:[%s337] sm:$0xf] %v1145
        %s1147 = sand.u32 %s137, 1
        %s1148 = scalar_lea.sflag [#allocation4], %s1147
        %s1149 = sand.u32 %s137, 1
        %s1150 = smul.addr %s1149, 8
        %s1151 = scalar_lea.vmem [#allocation7], %s1150
        %s1152 = sand.u32 %s30, 1
        %s1153 = scalar_lea.sflag [#allocation9], %s1152
        %s1154 = sand.u32 %s163, 1
        %s1155 = smul.addr %s1154, 8
        %s1156 = scalar_lea.vmem [#allocation8], %s1155
        %s1157 = sand.u32 %s30, 1
        %s1158 = scalar_lea.sflag [#allocation9], %s1157
        %s1159 = sand.u32 %s189, 1
        %s1160 = smul.addr %s1159, 4
        %s1161 = scalar_lea.vmem [#allocation10], %s1160
        // Predicated region
        $region45: #{tpu_custom_call.1} parent=35 // pred_check
          %p1162 = pneg %p147
        $region46: #{tpu_custom_call.1} parent=35 // pred_check_branch
          %1164 = sbr.rel (%p1162) target = $region48
        $region47: #{tpu_custom_call.1} parent=35 // pred_region
          %s1166 = ssub.s32 128, 128
          %1167 = vsyncadd %s1148, %s1166
          %s1168 = smul.addr %s30, 128
          %s1169 = scalar_lea.hbm %s4, %s1168
          %s1171 = sshll.u32 %s1151, 4
          %s1172 = int_to_ptr.vmem [resolvable:$true] %s1171
          %1174 = dma.vmem_to_hbm [thread:$0]  %s1172, 128, %s1169, %s1148
        $region48: #{tpu_custom_call.1} parent=35 // pred_fallthru
          _
        // Predicated region
        $region49: #{tpu_custom_call.1} parent=35 // pred_check
          %p1175 = pneg %p173
        $region50: #{tpu_custom_call.1} parent=35 // pred_check_branch
          %1177 = sbr.rel (%p1175) target = $region52
        $region51: #{tpu_custom_call.1} parent=35 // pred_region
          %s1179 = ssub.s32 128, 128
          %1180 = vsyncadd %s1153, %s1179
          %s1181 = smul.addr %s30, 128
          %s1182 = scalar_lea.hbm %s5, %s1181
          %s1184 = sshll.u32 %s1156, 4
          %s1185 = int_to_ptr.vmem [resolvable:$true] %s1184
          %1187 = dma.vmem_to_hbm [thread:$0]  %s1185, 128, %s1182, %s1153
        $region52: #{tpu_custom_call.1} parent=35 // pred_fallthru
          _
        // Predicated region
        $region53: #{tpu_custom_call.1} parent=35 // pred_check
          %p1188 = pneg %p199
        $region54: #{tpu_custom_call.1} parent=35 // pred_check_branch
          %1190 = sbr.rel (%p1188) target = $region56
        $region55: #{tpu_custom_call.1} parent=35 // pred_region
          %s1192 = ssub.s32 64, 64
          %1193 = vsyncadd %s1158, %s1192
          %s1194 = smul.addr %s30, 64
          %s1195 = scalar_lea.hbm %s6, %s1194
          %s1197 = sshll.u32 %s1161, 4
          %s1198 = int_to_ptr.vmem [resolvable:$true] %s1197
          %1200 = dma.vmem_to_hbm [thread:$0]  %s1198, 64, %s1195, %s1158
        $region56: #{tpu_custom_call.1} parent=35 // pred_fallthru
          _
      $region36: #{tpu_custom_call.1} parent=5 // pred_fallthru
        _
      %p1201 = scmp.le.s32.totalorder 2, %s25
      // Predicated region
      $region57: #{tpu_custom_call.1} parent=5 // pred_check
        %p1202 = pneg %p1201
      $region58: #{tpu_custom_call.1} parent=5 // pred_check_branch
        %1204 = sbr.rel (%p1202) target = $region60
      $region59: #{tpu_custom_call.1} parent=5 // pred_region
        %s1205 = ssub.s32 %s25, 2
        // Predicated region
        $region61: #{tpu_custom_call.1} parent=59 // pred_check
          %p1206 = pneg %p153
        $region62: #{tpu_custom_call.1} parent=59 // pred_check_branch
          %1208 = sbr.rel (%p1206) target = $region64
        $region63: #{tpu_custom_call.1} parent=59 // pred_region
          %s1209 = sand.u32 %s138, 1
          %s1210 = scalar_lea.sflag [#allocation4], %s1209
          %s1211 = sand.u32 %s138, 1
          %s1212 = smul.addr %s1211, 8
          %s1213 = scalar_lea.vmem [#allocation7], %s1212
          %1214 = dma.done %s1210, 128
        $region64: #{tpu_custom_call.1} parent=59 // pred_fallthru
          _
        // Predicated region
        $region65: #{tpu_custom_call.1} parent=59 // pred_check
          %p1215 = pneg %p179
        $region66: #{tpu_custom_call.1} parent=59 // pred_check_branch
          %1217 = sbr.rel (%p1215) target = $region68
        $region67: #{tpu_custom_call.1} parent=59 // pred_region
          %s1218 = sand.u32 %s31, 1
          %s1219 = scalar_lea.sflag [#allocation9], %s1218
          %s1220 = sand.u32 %s164, 1
          %s1221 = smul.addr %s1220, 8
          %s1222 = scalar_lea.vmem [#allocation8], %s1221
          %1223 = dma.done %s1219, 128
        $region68: #{tpu_custom_call.1} parent=59 // pred_fallthru
          _
        // Predicated region
        $region69: #{tpu_custom_call.1} parent=59 // pred_check
          %p1224 = pneg %p205
        $region70: #{tpu_custom_call.1} parent=59 // pred_check_branch
          %1226 = sbr.rel (%p1224) target = $region72
        $region71: #{tpu_custom_call.1} parent=59 // pred_region
          %s1227 = sand.u32 %s31, 1
          %s1228 = scalar_lea.sflag [#allocation9], %s1227
          %s1229 = sand.u32 %s190, 1
          %s1230 = smul.addr %s1229, 4
          %s1231 = scalar_lea.vmem [#allocation10], %s1230
          %1232 = dma.done %s1228, 64
        $region72: #{tpu_custom_call.1} parent=59 // pred_fallthru
          _
      $region60: #{tpu_custom_call.1} parent=5 // pred_fallthru
        _
    $region6: #{tpu_custom_call.1} parent=1 // loop_footer
      %s29 = sadd.s32 1, %s25
    $region7: #{tpu_custom_call.1} parent=1 // loop_footer_branch
      %24 = sbr.rel target = $region3
    $region8: #{tpu_custom_call.1} parent=1 // loop_exit
      _
    %1233 = vsyncpa [#allocation3], 1
    %s1234 = scalar_lea.sflag [#allocation3], 1
    %1235 = vsyncpa %s1234, 1
    %1236 = vsyncpa [#allocation6], 1
    %s1237 = scalar_lea.sflag [#allocation6], 1
    %1238 = vsyncpa %s1237, 1
    %1239 = vsyncpa [#allocation4], 1
    %s1240 = scalar_lea.sflag [#allocation4], 1
    %1241 = vsyncpa %s1240, 1
    %1242 = vsyncpa [#allocation9], 1
    %s1243 = scalar_lea.sflag [#allocation9], 1
    %1244 = vsyncpa %s1243, 1

</llo_original>
